<compile_context>
chip_gen: v7x
topology: tpu7x:2x2x1
jax: 0.10.0
libtpu: 0.0.40
codegen_flags: <defaults>
</compile_context>

<pallas_src>
from functools import partial

import jax
import jax.numpy as jnp
from jax import lax
from jax.experimental import pallas as pl
from jax.experimental.pallas import tpu as pltpu


# ----------------------------- Pallas kernel --------------------------------

def _rel_attn_head_kernel(qkv_ref, kembt_ref, o_ref, *, mxu_dtype,
                          approx_reciprocal):
    # qkv_ref  : (1, 1, 3, D, L)  one head's q/k/v, depth on sublanes, L on lanes
    # kembt_ref: (1, D, Mp)       this head's rel-key table, depth-major,
    #                             zero-padded to Mp lanes, already in mxu_dtype
    # o_ref    : (1, 1, L, D)
    L = o_ref.shape[2]
    Mp = kembt_ref.shape[2]

    q = qkv_ref[0, 0, 0].astype(mxu_dtype)          # [D, L]
    k = qkv_ref[0, 0, 1].astype(mxu_dtype)          # [D, L]
    v = qkv_ref[0, 0, 2].astype(mxu_dtype)          # [D, L]
    kembt = kembt_ref[0]                            # [D, Mp] (pre-cast)

    # Fused Q-side matmul: one MXU issue for content + relative-key logits.
    # kembT comes first so that both the concat seam and the split below sit
    # on a lane-aligned (multiple-of-128) boundary.
    keys = jnp.concatenate([kembt, k], axis=1)      # [D, Mp + L]
    fused = lax.dot_general(                        # q^T @ keys (TN form, no q.T)
        q, keys, (((0,), (0,)), ((), ())),
        preferred_element_type=jnp.float32)         # [L, Mp + L], f32
    rel = fused[:, :Mp]                             # [L, Mp]  (lane-aligned)
    logits = fused[:, Mp:]                          # [L, L]   (lane-aligned)

    # Relative -> absolute skew:  rel_abs[i, j] = rel[i, j - i + (L - 1)].
    # Single strided XLU rotate (rides a free VLIW slot under the MXU):
    # row i is rotated right by i (all amounts < L << Mp, no modular wrap),
    # then columns [L-1, 2L-1) are kept.  The zero-padded columns [M, Mp) are
    # never read (source column of kept entry (i, j) is j - i + L - 1 <= 2L-2).
    rolled = pltpu.roll(rel, shift=0, axis=1, stride=1, stride_axis=0)
    rel_abs = rolled[:, L - 1:2 * L - 1]            # [L, L]
    logits = logits + rel_abs

    # Numerically-stabilized softmax over memory positions, all in f32
    # (v5e has no bf16 VPU/EUP; exp-in-bf16 on v6e/v7x left as a follow-up).
    logits = logits - jnp.max(logits, axis=-1, keepdims=True)
    p = jnp.exp(logits)
    denom = jnp.sum(p, axis=-1, keepdims=True)
    if approx_reciprocal:
        w = p * pl.reciprocal(denom, approx=True)   # EUP slot, ~free
    else:
        w = p / denom

    # Weighted values: w @ v^T (NT form, no materialized v.T) -> [L, D]
    out = lax.dot_general(
        w.astype(mxu_dtype), v, (((1,), (1,)), ((), ())),
        preferred_element_type=jnp.float32)
    o_ref[0, 0, :, :] = out.astype(o_ref.dtype)


# ------------------------------ JAX wrapper ----------------------------------

@partial(jax.jit, static_argnames=("num_heads", "max_relative_position",
                                   "mxu_dtype", "approx_reciprocal"))
def qkv_attention_with_relative_position(qkv, k_emb, v_emb, num_heads,
                                         max_relative_position,
                                         mxu_dtype=jnp.float32,
                                         approx_reciprocal=True):
    """Forward pass of QKVAttentionWithRelativePosition (encoder_kv=None path).

    qkv:   [B, 3*H*D, L] (PyTorch channels-first layout; f32 or bf16)
    k_emb: [H, 2*max_relative_position - 1, D]
    v_emb: [H, 2*max_relative_position - 1, D]  (unused: add_relative_to_values=False)
    returns [B, H*D, L]  (via the reference's a.reshape(B, -1, L))
    """
    del v_emb  # not used when add_relative_to_values=False (matches reference)
    # TODO(synk): encoder_kv cross-attention branch not implemented (the
    # reference forward's default encoder_kv=None is what this kernel covers).
    B, C3, L = qkv.shape
    assert C3 % (3 * num_heads) == 0
    H = num_heads
    D = C3 // (3 * H)
    M = 2 * max_relative_position - 1
    assert M == k_emb.shape[1]
    assert M == 2 * L - 1, "reference skew math requires max_relative_position == L"
    Mp = max(128, ((M + 127) // 128) * 128)          # lane-aligned padded width

    # Free (contiguous) reinterpretation only -- no HBM transposes of q/k/v.
    qkv5 = qkv.reshape(B, H, 3, D, L)

    # Grid-invariant per-head table: depth-major, zero-padded to Mp lanes and
    # pre-cast to the MXU dtype ONCE here instead of per grid step.
    kembt = jnp.transpose(k_emb, (0, 2, 1)).astype(mxu_dtype)    # [H, D, M]
    kembt = jnp.pad(kembt, ((0, 0), (0, 0), (0, Mp - M)))        # [H, D, Mp]

    itemsize = qkv.dtype.itemsize
    msize = kembt.dtype.itemsize

    # Per-step VMEM footprint: double-buffered blocks + f32 intermediates
    # (fused [L, Mp+L], keys [D, Mp+L], a few [L, L] softmax temporaries).
    in_block = 3 * D * L * itemsize
    kemb_block = D * Mp * msize
    out_block = L * D * 4
    inter = 4 * (D * (Mp + L) + L * (Mp + L) + 4 * L * L)
    vmem_limit = int(min(64 << 20,                   # v7x physical ceiling
                         max(32 << 20,
                             2 * (in_block + kemb_block + out_block)
                             + 2 * inter + (4 << 20))))

    cost = pl.CostEstimate(
        flops=2 * B * H * (L * D * (Mp + L) + L * L * D),
        transcendentals=B * H * L * L,
        bytes_accessed=int(qkv5.size * itemsize + kembt.size * msize
                           + B * H * L * D * 4),
    )

    out = pl.pallas_call(
        partial(_rel_attn_head_kernel, mxu_dtype=mxu_dtype,
                approx_reciprocal=approx_reciprocal),
        out_shape=jax.ShapeDtypeStruct((B, H, L, D), jnp.float32),
        # H outer / B inner: kembt's block index is constant across the inner
        # B steps (fetched once per head); both axes are parallel so v7x can
        # shard the H*B steps across its two TensorCores.
        grid=(H, B),
        in_specs=[
            pl.BlockSpec((1, 1, 3, D, L), lambda h, b: (b, h, 0, 0, 0)),
            pl.BlockSpec((1, D, Mp), lambda h, b: (h, 0, 0)),
        ],
        out_specs=pl.BlockSpec((1, 1, L, D), lambda h, b: (b, h, 0, 0)),
        compiler_params=pltpu.CompilerParams(
            dimension_semantics=("parallel", "parallel"),
            vmem_limit_bytes=vmem_limit),
        cost_estimate=cost,
    )(qkv5, kembt)

    # TODO(synk): at deployment shapes, add a query-tile grid axis (for L in
    # the thousands) and a lane-dense (L*D-wide) output slab; at D=32/L=8 the
    # in-kernel [L,D]->[L*D] relayout would cost more than the masked stores
    # it removes, so the output stays (B, H, L, D) here.
    #
    # Matches torch: a.reshape(B, -1, L) -- a free row-major reinterpretation
    # of the contiguous [B, H, L, D] result, not a transpose.
    return out.reshape(B, -1, L)


# ----------------------- pure-JAX reference (for checking) -------------------

def _rel_to_abs_ref(x):
    b, h, l, _ = x.shape
    x = jnp.concatenate([x, jnp.zeros((b, h, l, 1), x.dtype)], axis=3)
    flat = x.reshape(b, h, l * 2 * l)
    flat = jnp.concatenate([flat, jnp.zeros((b, h, l - 1), x.dtype)], axis=2)
    final = flat.reshape(b, h, l + 1, 2 * l - 1)
    return final[:, :, :l, l - 1:]


def reference_forward(qkv, k_emb, num_heads):
    B, C3, L = qkv.shape
    D = C3 // (3 * num_heads)
    x = qkv.reshape(B, num_heads, 3 * D, L)
    q = jnp.transpose(x[:, :, 0:D, :], (0, 1, 3, 2))
    k = jnp.transpose(x[:, :, D:2 * D, :], (0, 1, 3, 2))
    v = jnp.transpose(x[:, :, 2 * D:3 * D, :], (0, 1, 3, 2))
    logits = jnp.einsum('bhld,bhmd->bhlm', q, k)
    rel = jnp.einsum('bhld,hmd->bhlm', q, k_emb)
    logits = logits + _rel_to_abs_ref(rel)
    w = jax.nn.softmax(logits, axis=-1)
    out = jnp.einsum('bhlm,bhmd->bhld', w, v)
    return out.reshape(B, -1, L)


# ---------------------------------- main --------------------------------------

if __name__ == "__main__":
    # small shapes consistent with the module
    B = 2                      # batch
    H = 2                      # num_heads
    D = 32                     # dim_head
    L = 8                      # sequence_length
    MAX_REL = L                # max_relative_position (must equal L, see module math)

    key = jax.random.PRNGKey(0)
    k_qkv, k_ke, k_ve = jax.random.split(key, 3)

    # deterministic parameter init (same shapes / stddev as the torch __init__)
    std = D ** (-0.5)
    k_emb = jax.random.normal(k_ke, (H, 2 * MAX_REL - 1, D), jnp.float32) * std
    v_emb = jax.random.normal(k_ve, (H, 2 * MAX_REL - 1, D), jnp.float32) * std

    qkv = jax.random.normal(k_qkv, (B, 3 * H * D, L), jnp.float32)

    out = qkv_attention_with_relative_position(
        qkv, k_emb, v_emb, num_heads=H, max_relative_position=MAX_REL)
    out = jax.block_until_ready(out)

    ref = jax.block_until_ready(reference_forward(qkv, k_emb, H))

    assert out.shape == (B, H * D, L), out.shape
    assert jnp.allclose(out, ref, atol=2e-2, rtol=2e-2), \
        float(jnp.max(jnp.abs(out - ref)))

    print("KERNEL_OK")
</pallas_src>

<mosaic_0001>
module attributes {stable_mosaic.version = 11 : i64} {
  func.func @_rel_attn_head_kernel(%arg0: i32, %arg1: i32, %arg2: memref<1x1x3x32x8xf32, #tpu.memory_space<vmem>>, %arg3: memref<1x32x128xf32, #tpu.memory_space<vmem>>, %arg4: memref<1x1x8x32xf32, #tpu.memory_space<vmem>>) attributes {dimension_semantics = [#tpu.dimension_semantics<parallel>, #tpu.dimension_semantics<parallel>], iteration_bounds = array<i64: 2, 2>, scalar_prefetch = 0 : i64, scratch_operands = 0 : i64, tpu.core_type = #tpu.core_type<tc>, window_params = [{transform_indices = @transform_0, window_bounds = array<i64: 1, 1, 3, 32, 8>}, {transform_indices = @transform_1, window_bounds = array<i64: 1, 32, 128>}, {transform_indices = @transform_2, window_bounds = array<i64: 1, 1, 8, 32>}]} {
    %c0 = arith.constant 0 : index
    %c0_0 = arith.constant 0 : index
    %c0_1 = arith.constant 0 : index
    %c0_2 = arith.constant 0 : index
    %c0_3 = arith.constant 0 : index
    %0 = vector.load %arg2[%c0, %c0_0, %c0_1, %c0_2, %c0_3] : memref<1x1x3x32x8xf32, #tpu.memory_space<vmem>>, vector<1x1x1x32x8xf32>
    %1 = vector.shape_cast %0 : vector<1x1x1x32x8xf32> to vector<32x8xf32>
    %c0_4 = arith.constant 0 : index
    %c0_5 = arith.constant 0 : index
    %c1 = arith.constant 1 : index
    %c0_6 = arith.constant 0 : index
    %c0_7 = arith.constant 0 : index
    %2 = vector.load %arg2[%c0_4, %c0_5, %c1, %c0_6, %c0_7] : memref<1x1x3x32x8xf32, #tpu.memory_space<vmem>>, vector<1x1x1x32x8xf32>
    %3 = vector.shape_cast %2 : vector<1x1x1x32x8xf32> to vector<32x8xf32>
    %c0_8 = arith.constant 0 : index
    %c0_9 = arith.constant 0 : index
    %c2 = arith.constant 2 : index
    %c0_10 = arith.constant 0 : index
    %c0_11 = arith.constant 0 : index
    %4 = vector.load %arg2[%c0_8, %c0_9, %c2, %c0_10, %c0_11] : memref<1x1x3x32x8xf32, #tpu.memory_space<vmem>>, vector<1x1x1x32x8xf32>
    %5 = vector.shape_cast %4 : vector<1x1x1x32x8xf32> to vector<32x8xf32>
    %c0_12 = arith.constant 0 : index
    %c0_13 = arith.constant 0 : index
    %c0_14 = arith.constant 0 : index
    %6 = vector.load %arg3[%c0_12, %c0_13, %c0_14] : memref<1x32x128xf32, #tpu.memory_space<vmem>>, vector<1x32x128xf32>
    %7 = vector.shape_cast %6 : vector<1x32x128xf32> to vector<32x128xf32>
    %8 = tpu.concatenate %7, %3 in 1 : vector<32x128xf32>, vector<32x8xf32> -> vector<32x136xf32>
    %cst = arith.constant dense<0.000000e+00> : vector<8x136xf32>
    %9 = tpu.matmul %1, %8, %cst {dimension_numbers = #tpu.dot_dimension_numbers<[0], [0], [1], [1], [0, 1, 1, 1], [], []>} : vector<32x8xf32>, vector<32x136xf32>, vector<8x136xf32> -> vector<8x136xf32>
    %10 = vector.extract_strided_slice %9 {offsets = [0, 0], sizes = [8, 128], strides = [1, 1]} : vector<8x136xf32> to vector<8x128xf32>
    %11 = vector.extract_strided_slice %9 {offsets = [0, 128], sizes = [8, 8], strides = [1, 1]} : vector<8x136xf32> to vector<8x8xf32>
    %c0_i32 = arith.constant 0 : i32
    %12 = tpu.dynamic_rotate %10 by %c0_i32 dim 1 {stride = 1 : si32, stride_dimension = 0 : si32} : vector<8x128xf32>, i32 -> vector<8x128xf32>
    %13 = vector.extract_strided_slice %12 {offsets = [0, 7], sizes = [8, 8], strides = [1, 1]} : vector<8x128xf32> to vector<8x8xf32>
    %14 = arith.addf %11, %13 : vector<8x8xf32>
    %cst_15 = arith.constant dense<0xFF800000> : vector<8xf32>
    %15 = vector.multi_reduction <maximumf>, %14, %cst_15 [1] : vector<8x8xf32> to vector<8xf32>
    %16 = vector.shape_cast %15 : vector<8xf32> to vector<8x1xf32>
    %17 = vector.broadcast %16 : vector<8x1xf32> to vector<8x8xf32>
    %18 = arith.subf %14, %17 : vector<8x8xf32>
    %19 = math.exp %18 : vector<8x8xf32>
    %cst_16 = arith.constant dense<0.000000e+00> : vector<8xf32>
    %20 = vector.multi_reduction <add>, %19, %cst_16 [1] : vector<8x8xf32> to vector<8xf32>
    %21 = vector.shape_cast %20 : vector<8xf32> to vector<8x1xf32>
    %22 = tpu.reciprocal %21 {approx = true} : vector<8x1xf32> -> vector<8x1xf32>
    %23 = vector.broadcast %22 : vector<8x1xf32> to vector<8x8xf32>
    %24 = arith.mulf %19, %23 : vector<8x8xf32>
    %cst_17 = arith.constant dense<0.000000e+00> : vector<8x32xf32>
    %25 = tpu.matmul %24, %5, %cst_17 {dimension_numbers = #tpu.dot_dimension_numbers<[1], [1], [0], [0], [0, 0, 1, 0], [], []>} : vector<8x8xf32>, vector<32x8xf32>, vector<8x32xf32> -> vector<8x32xf32>
    %c0_18 = arith.constant 0 : index
    %c0_19 = arith.constant 0 : index
    %c0_20 = arith.constant 0 : index
    %c0_21 = arith.constant 0 : index
    %26 = vector.load %arg4[%c0_18, %c0_19, %c0_20, %c0_21] : memref<1x1x8x32xf32, #tpu.memory_space<vmem>>, vector<1x1x8x32xf32>
    %27 = vector.shape_cast %26 : vector<1x1x8x32xf32> to vector<8x32xf32>
    %28 = vector.shape_cast %25 : vector<8x32xf32> to vector<1x1x8x32xf32>
    tpu.vector_store %arg4[%c0_18, %c0_19, %c0_20, %c0_21], %28 {strides = array<i32>} : memref<1x1x8x32xf32, #tpu.memory_space<vmem>>, vector<1x1x8x32xf32>,
    return
  }
  func.func @transform_0(%arg0: i32, %arg1: i32) -> (i32, i32, i32, i32, i32) {
    %c0_i32 = arith.constant 0 : i32
    %c0_i32_0 = arith.constant 0 : i32
    %c0_i32_1 = arith.constant 0 : i32
    %c0_i32_2 = arith.constant 0 : i32
    return %arg1, %arg0, %c0_i32, %c0_i32_0, %c0_i32_1 : i32, i32, i32, i32, i32
  }
  func.func @transform_1(%arg0: i32, %arg1: i32) -> (i32, i32, i32) {
    %c0_i32 = arith.constant 0 : i32
    %c0_i32_0 = arith.constant 0 : i32
    %c0_i32_1 = arith.constant 0 : i32
    return %arg0, %c0_i32, %c0_i32_0 : i32, i32, i32
  }
  func.func @transform_2(%arg0: i32, %arg1: i32) -> (i32, i32, i32, i32) {
    %c0_i32 = arith.constant 0 : i32
    %c0_i32_0 = arith.constant 0 : i32
    %c0_i32_1 = arith.constant 0 : i32
    return %arg1, %arg0, %c0_i32, %c0_i32_0 : i32, i32, i32, i32
  }
}

</mosaic_0001>

<llo_original>
// kernel: qkv_attention_with_relative_position.1
$region0: #{qkv_attention_with_relative_position.1}
  #allocation0 [shape = 'u32[]', space=smem, size = 0x4, offset = 0x4, fixed_abs, tag = 'smem constant byte address 0x4 - core index']
  #allocation1 [shape = 'u32[144,128]{1,0:T(1,128)}', space=vmem, size = 0x12000, scoped, tag = 'internal scratch']
  %s0 = inlined_call_operand.vmem [shape: f32[2,2,3,32,8], index: 0, kind: input, shape index: {}]
  %s1 = inlined_call_operand.vmem [shape: f32[2,32,128], index: 1, kind: input, shape index: {}]
  %s2 = inlined_call_operand.vmem [shape: f32[2,2,8,32], index: 2, kind: output, shape index: {}]
  %s3 = sld [smem:[#allocation0]]
  $region41: #{qkv_attention_with_relative_position.1} parent=0
    _
  %s5 = ssub.s32 1, %s3
  %s6 = scalar_select 0, %s5, %s3
  loop: start=0, step=1, limit=6
  $region2: #{qkv_attention_with_relative_position.1} parent=0 // loop_pre_header
    _
  $region3: #{qkv_attention_with_relative_position.1} parent=0 // loop_header
    %s8 = sphi 0, %s12
    %p9 = scmp.ge.s32.totalorder %s8, 6
    %s15 = sphi 0, %s27
    %s16 = sphi 0, %s23
    %s17 = sphi 0, %s15
    %s18 = sphi 0, %s16
    %s19 = sphi 0, %s17
    %s20 = sphi 0, %s18
    %s32 = sphi 0, %s34
    %s35 = sphi 0, %s32
    %s36 = sphi 0, %s35
    %s52 = sphi 0, %s36
    %s58 = sphi 0, %s60
    %s61 = sphi 0, %s58
    %s62 = sphi 0, %s61
    %s78 = sphi 0, %s62
    %s86 = sphi 0, %s88
    %s89 = sphi 0, %s86
    %s90 = sphi 0, %s89
    %s106 = sphi 0, %s90
  $region4: #{qkv_attention_with_relative_position.1} parent=0 // loop_header_branch
    %11 = sbr.rel (%p9) target = $region8
  $region5: #{qkv_attention_with_relative_position.1} parent=0 // loop_body
    %s13 = ssub.s32 %s8, 1
    %s14 = ssub.s32 %s8, 2
    %s21 = sadd.s32 1, %s16
    %p22 = scmp.ge.s32.totalorder %s21, 2
    %s23 = scalar_select %p22, 0, %s21
    %s24 = sadd.s32 1, %s15
    %s25 = scalar_select %p22, %s24, %s15
    %p26 = scmp.ge.s32.totalorder %s25, 2
    %s27 = scalar_select %p26, 0, %s25
    %s28 = ssub.s32 %s16, %s23
    %s29 = ssub.s32 %s15, %s27
    %s30 = sor.u32 %s28, %s29
    %p31 = scmp.eq.s32.totalorder %s30, 0
    %s33 = sadd.s32 %s32, 1
    %s34 = scalar_select %p31, %s32, %s33
    %p37 = pneg %p31
    %p38 = scmp.eq.s32.totalorder %s8, 3
    %p39 = por %p37, %p38
    %p40 = scmp.ne.s32.totalorder %s32, %s35
    %p41 = scmp.eq.s32.totalorder %s8, 0
    %p42 = por %p40, %p41
    %p43 = scmp.ne.s32.totalorder %s32, %s35
    %p44 = scmp.eq.s32.totalorder %s13, 3
    %p45 = por %p43, %p44
    %p46 = scmp.ne.s32.totalorder %s35, %s36
    %p47 = scmp.eq.s32.totalorder %s13, 0
    %p48 = por %p46, %p47
    %p49 = scmp.ne.s32.totalorder %s35, %s36
    %p50 = scmp.eq.s32.totalorder %s14, 3
    %p51 = por %p49, %p50
    %p53 = scmp.ne.s32.totalorder %s36, %s52
    %p54 = scmp.eq.s32.totalorder %s14, 0
    %p55 = por %p53, %p54
    %s56 = ssub.s32 %s15, %s27
    %p57 = scmp.eq.s32.totalorder %s56, 0
    %s59 = sadd.s32 %s58, 1
    %s60 = scalar_select %p57, %s58, %s59
    %p63 = pneg %p57
    %p64 = scmp.eq.s32.totalorder %s8, 3
    %p65 = por %p63, %p64
    %p66 = scmp.ne.s32.totalorder %s58, %s61
    %p67 = scmp.eq.s32.totalorder %s8, 0
    %p68 = por %p66, %p67
    %p69 = scmp.ne.s32.totalorder %s58, %s61
    %p70 = scmp.eq.s32.totalorder %s13, 3
    %p71 = por %p69, %p70
    %p72 = scmp.ne.s32.totalorder %s61, %s62
    %p73 = scmp.eq.s32.totalorder %s13, 0
    %p74 = por %p72, %p73
    %p75 = scmp.ne.s32.totalorder %s61, %s62
    %p76 = scmp.eq.s32.totalorder %s14, 3
    %p77 = por %p75, %p76
    %p79 = scmp.ne.s32.totalorder %s62, %s78
    %p80 = scmp.eq.s32.totalorder %s14, 0
    %p81 = por %p79, %p80
    %s82 = ssub.s32 %s16, %s23
    %s83 = ssub.s32 %s15, %s27
    %s84 = sor.u32 %s82, %s83
    %p85 = scmp.eq.s32.totalorder %s84, 0
    %s87 = sadd.s32 %s86, 1
    %s88 = scalar_select %p85, %s86, %s87
    %p91 = pneg %p85
    %p92 = scmp.eq.s32.totalorder %s8, 3
    %p93 = por %p91, %p92
    %p94 = scmp.ne.s32.totalorder %s86, %s89
    %p95 = scmp.eq.s32.totalorder %s8, 0
    %p96 = por %p94, %p95
    %p97 = scmp.ne.s32.totalorder %s86, %s89
    %p98 = scmp.eq.s32.totalorder %s13, 3
    %p99 = por %p97, %p98
    %p100 = scmp.ne.s32.totalorder %s89, %s90
    %p101 = scmp.eq.s32.totalorder %s13, 0
    %p102 = por %p100, %p101
    %p103 = scmp.ne.s32.totalorder %s89, %s90
    %p104 = scmp.eq.s32.totalorder %s14, 3
    %p105 = por %p103, %p104
    %p107 = scmp.ne.s32.totalorder %s90, %s106
    %p108 = scmp.eq.s32.totalorder %s14, 0
    %p109 = por %p107, %p108
    %p110 = scmp.le.s32.totalorder 1, %s8
    %p111 = scmp.lt.s32.totalorder %s8, 5
    %p112 = pnand %p110, %p111
    %p113 = pneg %p112
    // Predicated region
    $region9: #{qkv_attention_with_relative_position.1} parent=5 // pred_check
      _
    $region10: #{qkv_attention_with_relative_position.1} parent=5 // pred_check_branch
      %115 = sbr.rel (%p112) target = $region12
    $region11: #{qkv_attention_with_relative_position.1} parent=5 // pred_region
      %s116 = ssub.s32 %s8, 1
    $region12: #{qkv_attention_with_relative_position.1} parent=5 // pred_fallthru
      _
    %p117 = scmp.lt.s32.totalorder %s8, 4
    // Predicated region
    $region13: #{qkv_attention_with_relative_position.1} parent=5 // pred_check
      %p118 = pneg %p117
    $region14: #{qkv_attention_with_relative_position.1} parent=5 // pred_check_branch
      %120 = sbr.rel (%p118) target = $region16
    $region15: #{qkv_attention_with_relative_position.1} parent=5 // pred_region
      // Predicated region
      $region17: #{qkv_attention_with_relative_position.1} parent=15 // pred_check
        %p121 = pneg %p42
      $region18: #{qkv_attention_with_relative_position.1} parent=15 // pred_check_branch
        %123 = sbr.rel (%p121) target = $region20
      $region19: #{qkv_attention_with_relative_position.1} parent=15 // pred_region
        %p124 = scmp.lt.s32.totalorder %s16, 1
        %s125 = scalar_select %p124, %s16, 1
        %p126 = scmp.lt.s32.totalorder %s15, 1
        %s127 = scalar_select %p126, %s15, 1
        %s128 = smul.addr %s127, 12
        %s129 = smul.addr %s125, 24
        %s130 = sadd.s32 %s128, %s129
        %s131 = smul.addr %s130, 8
        %s132 = scalar_lea.vmem %s0, %s131
      $region20: #{qkv_attention_with_relative_position.1} parent=15 // pred_fallthru
        _
      // Predicated region
      $region21: #{qkv_attention_with_relative_position.1} parent=15 // pred_check
        %p133 = pneg %p68
      $region22: #{qkv_attention_with_relative_position.1} parent=15 // pred_check_branch
        %135 = sbr.rel (%p133) target = $region24
      $region23: #{qkv_attention_with_relative_position.1} parent=15 // pred_region
        %p136 = scmp.lt.s32.totalorder %s15, 1
        %s137 = scalar_select %p136, %s15, 1
        %s138 = smul.addr %s137, 4
        %s139 = smul.addr %s138, 8
        %s140 = scalar_lea.vmem %s1, %s139
      $region24: #{qkv_attention_with_relative_position.1} parent=15 // pred_fallthru
        _
    $region16: #{qkv_attention_with_relative_position.1} parent=5 // pred_fallthru
      _
    %p141 = scmp.le.s32.totalorder 1, %s8
    %p142 = scmp.lt.s32.totalorder %s8, 5
    %p143 = pnand %p141, %p142
    %p144 = pneg %p143
    // Predicated region
    $region25: #{qkv_attention_with_relative_position.1} parent=5 // pred_check
      _
    $region26: #{qkv_attention_with_relative_position.1} parent=5 // pred_check_branch
      %146 = sbr.rel (%p143) target = $region28
    $region27: #{qkv_attention_with_relative_position.1} parent=5 // pred_region
      %s147 = ssub.s32 %s8, 1
      %p148 = scmp.lt.s32.totalorder %s18, 1
      %s149 = scalar_select %p148, %s18, 1
      %p150 = scmp.lt.s32.totalorder %s17, 1
      %s151 = scalar_select %p150, %s17, 1
      %s152 = smul.addr %s151, 12
      %s153 = smul.addr %s149, 24
      %s154 = sadd.s32 %s152, %s153
      %s155 = smul.addr %s154, 8
      %s156 = scalar_lea.vmem %s0, %s155
      %p157 = pneg %p48
      %p158 = pneg %p45
      %p159 = scmp.lt.s32.totalorder %s17, 1
      %s160 = scalar_select %p159, %s17, 1
      %s161 = smul.addr %s160, 4
      %s162 = smul.addr %s161, 8
      %s163 = scalar_lea.vmem %s1, %s162
      %p164 = pneg %p74
      %p165 = pneg %p71
      %p166 = pneg %p102
      %p167 = pneg %p99
      %p168 = scmp.lt.s32.totalorder %s18, 1
      %s169 = scalar_select %p168, %s18, 1
      %p170 = scmp.lt.s32.totalorder %s17, 1
      %s171 = scalar_select %p170, %s17, 1
      %s172 = smul.addr %s169, 2
      %s173 = sadd.s32 %s171, %s172
      %s174 = smul.addr %s173, 8
      %s175 = scalar_lea.vmem %s2, %s174
      %p176 = scmp.lt.s32.totalorder %s18, 1
      %s177 = scalar_select %p176, %s18, 1
      %p178 = scmp.lt.s32.totalorder %s17, 1
      %s179 = scalar_select %p178, %s17, 1
      %s180 = smul.addr %s179, 12
      %s181 = smul.addr %s177, 24
      %s182 = sadd.s32 %s180, %s181
      %s183 = smul.addr %s182, 8
      %s184 = scalar_lea.vmem %s0, %s183
      %p185 = scmp.lt.s32.totalorder %s17, 1
      %s186 = scalar_select %p185, %s17, 1
      %s187 = smul.addr %s186, 4
      %s188 = smul.addr %s187, 8
      %s189 = scalar_lea.vmem %s1, %s188
      %p190 = scmp.lt.s32.totalorder %s18, 1
      %s191 = scalar_select %p190, %s18, 1
      %p192 = scmp.lt.s32.totalorder %s17, 1
      %s193 = scalar_select %p192, %s17, 1
      %s194 = smul.addr %s191, 2
      %s195 = sadd.s32 %s193, %s194
      %s196 = smul.addr %s195, 8
      %s197 = scalar_lea.vmem %s2, %s196
      %v198 = vld [vmem:[%s184] sm:$0xff]
      %v199 = vld [vmem:[%s184 + $0x8] sm:$0xff]
      %v200 = vld [vmem:[%s184 + $0x10] sm:$0xff]
      %v201 = vld [vmem:[%s184 + $0x18] sm:$0xff]
      %s202 = scalar_lea.vmem %s184, 32
      %v203 = vld [vmem:[%s202] sm:$0xff]
      %v204 = vld [vmem:[%s202 + $0x8] sm:$0xff]
      %v205 = vld [vmem:[%s202 + $0x10] sm:$0xff]
      %v206 = vld [vmem:[%s202 + $0x18] sm:$0xff]
      %s207 = scalar_lea.vmem %s184, 64
      %v208 = vld [vmem:[%s207] sm:$0xff]
      %v209 = vld [vmem:[%s207 + $0x8] sm:$0xff]
      %v210 = vld [vmem:[%s207 + $0x10] sm:$0xff]
      %v211 = vld [vmem:[%s207 + $0x18] sm:$0xff]
      %v212 = vld [vmem:[%s189] sm:$0xff]
      %v213 = vld [vmem:[%s189 + $0x8] sm:$0xff]
      %v214 = vld [vmem:[%s189 + $0x10] sm:$0xff]
      %v215 = vld [vmem:[%s189 + $0x18] sm:$0xff]
      %216 = vxpose.xlu0.b32.start [1/16] %v198, 128
      %217 = vxpose.xlu0.b32.cont [2/16] %v199, 128
      %218 = vxpose.xlu0.b32.cont [3/16] %v200, 128
      %219 = vxpose.xlu0.b32.cont [4/16] %v201, 128
      %220 = vxpose.xlu0.b32.cont [5/16] 0.0, 128
      %221 = vxpose.xlu0.b32.cont [6/16] 0.0, 128
      %222 = vxpose.xlu0.b32.cont [7/16] 0.0, 128
      %223 = vxpose.xlu0.b32.cont [8/16] 0.0, 128
      %224 = vxpose.xlu0.b32.cont [9/16] 0.0, 128
      %225 = vxpose.xlu0.b32.cont [10/16] 0.0, 128
      %226 = vxpose.xlu0.b32.cont [11/16] 0.0, 128
      %227 = vxpose.xlu0.b32.cont [12/16] 0.0, 128
      %228 = vxpose.xlu0.b32.cont [13/16] 0.0, 128
      %229 = vxpose.xlu0.b32.cont [14/16] 0.0, 128
      %230 = vxpose.xlu0.b32.cont [15/16] 0.0, 128
      %231 = vxpose.xlu0.b32.end [16/16] 0.0, 128
      %v232 = vpop.trf.xlu0
      %v233 = vpop.trf.xlu0
      %v234 = vpop.trf.xlu0
      %v235 = vpop.trf.xlu0
      %v236 = vpop.trf.xlu0
      %v237 = vpop.trf.xlu0
      %v238 = vpop.trf.xlu0
      %v239 = vpop.trf.xlu0
      %v240 = vpop.trf.xlu0
      %v241 = vpop.trf.xlu0
      %v242 = vpop.trf.xlu0
      %v243 = vpop.trf.xlu0
      %v244 = vpop.trf.xlu0
      %v245 = vpop.trf.xlu0
      %v246 = vpop.trf.xlu0
      %v247 = vpop.trf.xlu0
      %vm248 = vcmask 261120
      %v250 = vsel %vm248, %v232, 0
      %252 = vmatprep.subr.mxu0 %v203
      %253 = vmatpush1.msra.mxu0 %v212
      %254 = vmatprep.subr.mxu0 %v204
      %255 = vmatpush1.msra.mxu0 %v213
      %256 = vmatprep.subr.mxu0 %v205
      %257 = vmatpush1.msra.mxu0 %v214
      %258 = vmatprep.subr.mxu0 %v206
      %259 = vmatpush1.msra.mxu0 %v215
      %260 = vmatprep.subr.mxu0 0.0
      %261 = vmatpush1.msra.mxu0 0.0
      %262 = vmatprep.subr.mxu0 0.0
      %263 = vmatpush1.msra.mxu0 0.0
      %264 = vmatprep.subr.mxu0 0.0
      %265 = vmatpush1.msra.mxu0 0.0
      %266 = vmatprep.subr.mxu0 0.0
      %267 = vmatpush1.msra.mxu0 0.0
      %268 = vmatprep.subr.mxu0 0.0
      %269 = vmatpush1.msra.mxu0 0.0
      %270 = vmatprep.subr.mxu0 0.0
      %271 = vmatpush1.msra.mxu0 0.0
      %272 = vmatprep.subr.mxu0 0.0
      %273 = vmatpush1.msra.mxu0 0.0
      %274 = vmatprep.subr.mxu0 0.0
      %275 = vmatpush1.msra.mxu0 0.0
      %276 = vmatprep.subr.mxu0 0.0
      %277 = vmatpush1.msra.mxu0 0.0
      %278 = vmatprep.subr.mxu0 0.0
      %279 = vmatpush1.msra.mxu0 0.0
      %280 = vmatprep.subr.mxu0 0.0
      %281 = vmatpush1.msra.mxu0 0.0
      %282 = vmatprep.subr.mxu0 0.0
      %283 = vmatpush1.msra.mxu0 0.0
      %284 = vmatprep.subr.mxu0 0.0
      %285 = vmatpush1.msra.mxu0 0.0
      %286 = vmatprep.subr.mxu0 0.0
      %287 = vmatpush1.msra.mxu0 0.0
      %288 = vmatprep.subr.mxu0 0.0
      %289 = vmatpush1.msra.mxu0 0.0
      %290 = vmatprep.subr.mxu0 0.0
      %291 = vmatpush1.msra.mxu0 0.0
      %292 = vmatprep.subr.mxu0 0.0
      %293 = vmatpush1.msra.mxu0 0.0
      %294 = vmatprep.subr.mxu0 0.0
      %295 = vmatpush1.msra.mxu0 0.0
      %296 = vmatprep.subr.mxu0 0.0
      %297 = vmatpush1.msra.mxu0 0.0
      %298 = vmatprep.subr.mxu0 0.0
      %299 = vmatpush1.msra.mxu0 0.0
      %300 = vmatprep.subr.mxu0 0.0
      %301 = vmatpush1.msra.mxu0 0.0
      %302 = vmatprep.subr.mxu0 0.0
      %303 = vmatpush1.msra.mxu0 0.0
      %304 = vmatprep.subr.mxu0 0.0
      %305 = vmatpush1.msra.mxu0 0.0
      %306 = vmatprep.subr.mxu0 0.0
      %307 = vmatpush1.msra.mxu0 0.0
      %308 = vmatprep.subr.mxu0 0.0
      %309 = vmatpush1.msra.mxu0 0.0
      %310 = vmatprep.subr.mxu0 0.0
      %311 = vmatpush1.msra.mxu0 0.0
      %312 = vmatprep.subr.mxu0 0.0
      %313 = vmatpush1.msra.mxu0 0.0
      %314 = vmatprep.subr.mxu0 0.0
      %315 = vmatpush1.msra.mxu0 0.0
      %316 = vmatprep.mubr.f32.mxu0 0.0
      %317 = vmatmul.mubr.f32.gmra.mrb[0].mxu0 %v250
      %v318 = vpop.f32.mrb[0].mxu0
      %v319 = vadd.f32 0.0, %v318
      %v320 = vpop.f32.mrb[0].mxu0
      %v321 = vadd.f32 0.0, %v320
      %322 = vdwg.mxu0
      %324 = vrot.lane.b32.xlu0 %v319, 256
      %v325 = vpop.permute.xlu0 %324
      %327 = vrot.lane.b32.xlu0 %v325, 121
      %v328 = vpop.permute.xlu0 %327
      %v330 = vadd.f32 %v321, %v328
      %vm331 = vcmask 64512
      %v332 = vsel %vm331, %v330, -inf
      %333 = vmax.xlane.f32.xlu0 %v332
      %v334 = vpop.xlane.xlu0 %333
      %v335 = vsub.f32 %v330, %v334
      %v336 = vmul.f32 %v335, 1.442695
      %v337 = vpow.pop %v336
      %v338 = vsel %vm331, %v337, 0.0
      %339 = vadd.xlane.f32.xlu0 %v338
      %v340 = vpop.xlane.xlu0 %339
      %v341 = vrcp.pop %v340
      %v342 = vmul.f32 %v337, %v341
      %v344 = vsel %vm331, %v342, 0
      %v347 = vsel %vm331, %v208, 0
      %v350 = vsel %vm331, %v209, 0
      %v353 = vsel %vm331, %v210, 0
      %v356 = vsel %vm331, %v211, 0
      %358 = vmatprep.subr.mxu0 0.0
      %359 = vmatpush1.xpose.msra.mxu0 %v347
      %360 = vmatprep.subr.mxu0 0.0
      %361 = vmatpush1.xpose.msra.mxu0 %v350
      %362 = vmatprep.subr.mxu0 0.0
      %363 = vmatpush1.xpose.msra.mxu0 %v353
      %364 = vmatprep.subr.mxu0 0.0
      %365 = vmatpush1.xpose.msra.mxu0 %v356
      %366 = vmatprep.subr.mxu0 0.0
      %367 = vmatpush1.xpose.msra.mxu0 0.0
      %368 = vmatprep.subr.mxu0 0.0
      %369 = vmatpush1.xpose.msra.mxu0 0.0
      %370 = vmatprep.subr.mxu0 0.0
      %371 = vmatpush1.xpose.msra.mxu0 0.0
      %372 = vmatprep.subr.mxu0 0.0
      %373 = vmatpush1.xpose.msra.mxu0 0.0
      %374 = vmatprep.subr.mxu0 0.0
      %375 = vmatpush1.xpose.msra.mxu0 0.0
      %376 = vmatprep.subr.mxu0 0.0
      %377 = vmatpush1.xpose.msra.mxu0 0.0
      %378 = vmatprep.subr.mxu0 0.0
      %379 = vmatpush1.xpose.msra.mxu0 0.0
      %380 = vmatprep.subr.mxu0 0.0
      %381 = vmatpush1.xpose.msra.mxu0 0.0
      %382 = vmatprep.subr.mxu0 0.0
      %383 = vmatpush1.xpose.msra.mxu0 0.0
      %384 = vmatprep.subr.mxu0 0.0
      %385 = vmatpush1.xpose.msra.mxu0 0.0
      %386 = vmatprep.subr.mxu0 0.0
      %387 = vmatpush1.xpose.msra.mxu0 0.0
      %388 = vmatprep.subr.mxu0 0.0
      %389 = vmatpush1.xpose.msra.mxu0 0.0
      %390 = vmatprep.subr.mxu0 0.0
      %391 = vmatpush1.xpose.msra.mxu0 0.0
      %392 = vmatprep.subr.mxu0 0.0
      %393 = vmatpush1.xpose.msra.mxu0 0.0
      %394 = vmatprep.subr.mxu0 0.0
      %395 = vmatpush1.xpose.msra.mxu0 0.0
      %396 = vmatprep.subr.mxu0 0.0
      %397 = vmatpush1.xpose.msra.mxu0 0.0
      %398 = vmatprep.subr.mxu0 0.0
      %399 = vmatpush1.xpose.msra.mxu0 0.0
      %400 = vmatprep.subr.mxu0 0.0
      %401 = vmatpush1.xpose.msra.mxu0 0.0
      %402 = vmatprep.subr.mxu0 0.0
      %403 = vmatpush1.xpose.msra.mxu0 0.0
      %404 = vmatprep.subr.mxu0 0.0
      %405 = vmatpush1.xpose.msra.mxu0 0.0
      %406 = vmatprep.subr.mxu0 0.0
      %407 = vmatpush1.xpose.msra.mxu0 0.0
      %408 = vmatprep.subr.mxu0 0.0
      %409 = vmatpush1.xpose.msra.mxu0 0.0
      %410 = vmatprep.subr.mxu0 0.0
      %411 = vmatpush1.xpose.msra.mxu0 0.0
      %412 = vmatprep.subr.mxu0 0.0
      %413 = vmatpush1.xpose.msra.mxu0 0.0
      %414 = vmatprep.subr.mxu0 0.0
      %415 = vmatpush1.xpose.msra.mxu0 0.0
      %416 = vmatprep.subr.mxu0 0.0
      %417 = vmatpush1.xpose.msra.mxu0 0.0
      %418 = vmatprep.subr.mxu0 0.0
      %419 = vmatpush1.xpose.msra.mxu0 0.0
      %420 = vmatprep.subr.mxu0 0.0
      %421 = vmatpush1.xpose.msra.mxu0 0.0
      %422 = vmatprep.mubr.f32.mxu0 0.0
      %423 = vmatmul.mubr.f32.gmra.mrb[0].mxu0 %v344
      %v424 = vpop.f32.mrb[0].mxu0
      %v425 = vadd.f32 0.0, %v424
      %v426 = vpop.f32.mrb[0].mxu0
      %427 = vdwg.mxu0
      %428 = vst.msk [vmem:[%s197] sm:$0xff] %vm248, %v425
      %p429 = scmp.lt.s32.totalorder %s18, 1
      %s430 = scalar_select %p429, %s18, 1
      %p431 = scmp.lt.s32.totalorder %s17, 1
      %s432 = scalar_select %p431, %s17, 1
      %s433 = smul.addr %s430, 2
      %s434 = sadd.s32 %s432, %s433
      %s435 = smul.addr %s434, 8
      %s436 = scalar_lea.vmem %s2, %s435
      // Predicated region
      $region29: #{qkv_attention_with_relative_position.1} parent=27 // pred_check
        %p437 = pneg %p99
      $region30: #{qkv_attention_with_relative_position.1} parent=27 // pred_check_branch
        %439 = sbr.rel (%p437) target = $region32
      $region31: #{qkv_attention_with_relative_position.1} parent=27 // pred_region
        _
      $region32: #{qkv_attention_with_relative_position.1} parent=27 // pred_fallthru
        _
    $region28: #{qkv_attention_with_relative_position.1} parent=5 // pred_fallthru
      _
    %p440 = scmp.le.s32.totalorder 2, %s8
    // Predicated region
    $region33: #{qkv_attention_with_relative_position.1} parent=5 // pred_check
      %p441 = pneg %p440
    $region34: #{qkv_attention_with_relative_position.1} parent=5 // pred_check_branch
      %443 = sbr.rel (%p441) target = $region36
    $region35: #{qkv_attention_with_relative_position.1} parent=5 // pred_region
      %s444 = ssub.s32 %s8, 2
      // Predicated region
      $region37: #{qkv_attention_with_relative_position.1} parent=35 // pred_check
        %p445 = pneg %p105
      $region38: #{qkv_attention_with_relative_position.1} parent=35 // pred_check_branch
        %447 = sbr.rel (%p445) target = $region40
      $region39: #{qkv_attention_with_relative_position.1} parent=35 // pred_region
        %p448 = scmp.lt.s32.totalorder %s20, 1
        %s449 = scalar_select %p448, %s20, 1
        %p450 = scmp.lt.s32.totalorder %s19, 1
        %s451 = scalar_select %p450, %s19, 1
        %s452 = smul.addr %s449, 2
        %s453 = sadd.s32 %s451, %s452
        %s454 = smul.addr %s453, 8
        %s455 = scalar_lea.vmem %s2, %s454
      $region40: #{qkv_attention_with_relative_position.1} parent=35 // pred_fallthru
        _
    $region36: #{qkv_attention_with_relative_position.1} parent=5 // pred_fallthru
      _
  $region6: #{qkv_attention_with_relative_position.1} parent=0 // loop_footer
    %s12 = sadd.s32 1, %s8
  $region7: #{qkv_attention_with_relative_position.1} parent=0 // loop_footer_branch
    %7 = sbr.rel target = $region3
  $region8: #{qkv_attention_with_relative_position.1} parent=0 // loop_exit
    _

</llo_original>
